<compile_context>
chip_gen: v5e
topology: v5e:2x2
jax: 0.10.0
libtpu: 0.0.40
codegen_flags: <defaults>
</compile_context>

<pallas_src>
import functools

import jax
import jax.numpy as jnp
from jax.experimental import pallas as pl
from jax.experimental.pallas import tpu as pltpu


def _round_up(x, m):
    return (x + m - 1) // m * m


def actor_critic_kernel(state_ref, w1_ref, w2_ref, vecs_ref, w_out_ref,
                        b_out_ref, out_ref, *, latent_dim, latent_pad):
    # Shapes (full blocks resident in VMEM):
    #   state : [Bp, S]   bf16
    #   w1    : [S, 128]  bf16
    #   w2    : [128, Lp] bf16   (cols >= latent_dim are zero)
    #   vecs  : [4, P]    f32    rows = (b1, b2, gamma, beta), zero-padded
    #   w_out : [Lp, Vp]  bf16   = [emb.T | wc | 0-pad]  along lanes
    #   b_out : [1, Vp]   f32    = [0...0 | bc | 0-pad]
    #   out   : [Bp, Vp]  f32    = [logits | value | pad]
    x = state_ref[...]

    vecs = vecs_ref[...]
    b1 = vecs[0:1, :128]
    b2 = vecs[1:2, :latent_pad]
    gamma = vecs[2:3, :latent_pad]
    beta = vecs[3:4, :latent_pad]

    # fc1 + ReLU: bf16 operands, f32 accumulation on the MXU.
    h = jnp.dot(x, w1_ref[...], preferred_element_type=jnp.float32) + b1
    h = jnp.maximum(h, 0.0)                                        # [Bp, 128] f32

    # fc2: padded latent lanes come out exactly zero (w2 cols / b2 are zero).
    latent = jnp.dot(h.astype(jnp.bfloat16), w2_ref[...],
                     preferred_element_type=jnp.float32) + b2      # [Bp, Lp] f32

    # LayerNorm over the TRUE latent_dim, single-pass sum / sum-of-squares.
    # Padded lanes are zero so reducing over all Lp lanes is exact; the
    # divisor must stay 1/latent_dim, not 1/Lp.
    inv_l = jnp.float32(1.0 / latent_dim)
    s1 = jnp.sum(latent, axis=-1, keepdims=True)
    s2 = jnp.sum(latent * latent, axis=-1, keepdims=True)
    mean = s1 * inv_l
    var = s2 * inv_l - mean * mean
    normed = (latent - mean) * jax.lax.rsqrt(var + 1e-5)
    # gamma/beta are zero on padded lanes -> padded lanes of latent_ln are 0.
    latent_ln = normed * gamma + beta                              # [Bp, Lp] f32

    # Fused actor logits + critic value: one lane-dense matmul + bias.
    out_ref[...] = jnp.dot(latent_ln.astype(jnp.bfloat16), w_out_ref[...],
                           preferred_element_type=jnp.float32) + b_out_ref[...]


def prepare_params(raw, state_dim, latent_dim, vocab):
    """Pack/pad raw (PyTorch-layout) params for the fused kernel."""
    del state_dim
    latent_pad = _round_up(latent_dim, 128)
    vocab_pad = _round_up(vocab + 1, 128)          # +1 column for the critic head
    p = max(128, latent_pad)

    w1 = raw["w1"].astype(jnp.bfloat16)                                   # [S, 128]

    w2 = jnp.zeros((128, latent_pad), jnp.float32)
    w2 = w2.at[:, :latent_dim].set(raw["w2"]).astype(jnp.bfloat16)        # [128, Lp]

    def pad_vec(v, n):
        return jnp.zeros((p,), jnp.float32).at[:n].set(v.reshape(-1))

    vecs = jnp.stack([pad_vec(raw["b1"], 128),
                      pad_vec(raw["b2"], latent_dim),
                      pad_vec(raw["gamma"], latent_dim),
                      pad_vec(raw["beta"], latent_dim)], axis=0)          # [4, P] f32

    w_out = jnp.zeros((latent_pad, vocab_pad), jnp.float32)
    w_out = w_out.at[:latent_dim, :vocab].set(raw["emb"].T)
    w_out = w_out.at[:latent_dim, vocab].set(raw["wc"].reshape(-1))
    w_out = w_out.astype(jnp.bfloat16)                                    # [Lp, Vp]

    b_out = jnp.zeros((1, vocab_pad), jnp.float32)
    b_out = b_out.at[0, vocab].set(raw["bc"].reshape(()))                 # [1, Vp]

    return dict(w1=w1, w2=w2, vecs=vecs, w_out=w_out, b_out=b_out,
                latent_dim=latent_dim, latent_pad=latent_pad,
                vocab=vocab, vocab_pad=vocab_pad)


def actor_critic_forward(state, prepped):
    B, state_dim = state.shape
    latent_dim = prepped["latent_dim"]
    latent_pad = prepped["latent_pad"]
    vocab = prepped["vocab"]
    vocab_pad = prepped["vocab_pad"]

    # bf16 packs 16 rows per vreg -> pad the batch to a multiple of 16.
    b_pad = _round_up(max(B, 1), 16)
    state_p = jnp.zeros((b_pad, state_dim), jnp.bfloat16)
    state_p = state_p.at[:B].set(state.astype(jnp.bfloat16))

    kernel = functools.partial(actor_critic_kernel,
                               latent_dim=latent_dim, latent_pad=latent_pad)

    vmem = pl.BlockSpec(memory_space=pltpu.MemorySpace.VMEM)
    out = pl.pallas_call(
        kernel,
        out_shape=jax.ShapeDtypeStruct((b_pad, vocab_pad), jnp.float32),
        in_specs=[vmem] * 6,
        out_specs=vmem,
    )(state_p, prepped["w1"], prepped["w2"], prepped["vecs"],
      prepped["w_out"], prepped["b_out"])

    logits = out[:B, :vocab]
    value = out[:B, vocab:vocab + 1]
    return logits, value


def init_raw_params(key, state_dim, latent_dim, vocab):
    """PyTorch-equivalent parameters (Linear weights stored transposed [in, out])."""
    ks = jax.random.split(key, 4)
    w1 = jax.random.normal(ks[0], (state_dim, 128), jnp.float32) * 0.05
    b1 = jnp.zeros((128,), jnp.float32)
    w2 = jax.random.normal(ks[1], (128, latent_dim), jnp.float32) * 0.05
    b2 = jnp.zeros((latent_dim,), jnp.float32)
    gamma = jnp.ones((latent_dim,), jnp.float32)
    beta = jnp.zeros((latent_dim,), jnp.float32)
    emb = jax.random.normal(ks[2], (vocab, latent_dim), jnp.float32) * 0.1
    wc = jax.random.normal(ks[3], (latent_dim, 1), jnp.float32) * 0.05
    bc = jnp.zeros((1,), jnp.float32)
    return dict(w1=w1, b1=b1, w2=w2, b2=b2, gamma=gamma, beta=beta,
                emb=emb, wc=wc, bc=bc)


def reference_forward(state, raw):
    """Pure-JAX reference mirroring the PyTorch module, with matmul operands
    in bf16 + f32 accumulation to match the kernel's MXU precision."""
    f32 = jnp.float32
    h = jnp.dot(state.astype(jnp.bfloat16), raw["w1"].astype(jnp.bfloat16),
                preferred_element_type=f32) + raw["b1"]
    h = jnp.maximum(h, 0.0)
    latent = jnp.dot(h.astype(jnp.bfloat16), raw["w2"].astype(jnp.bfloat16),
                     preferred_element_type=f32) + raw["b2"]
    mean = jnp.mean(latent, axis=-1, keepdims=True)
    var = jnp.mean((latent - mean) ** 2, axis=-1, keepdims=True)
    latent = (latent - mean) / jnp.sqrt(var + 1e-5)
    latent = latent * raw["gamma"] + raw["beta"]
    logits = jnp.dot(latent.astype(jnp.bfloat16),
                     raw["emb"].T.astype(jnp.bfloat16),
                     preferred_element_type=f32)
    value = jnp.dot(latent.astype(jnp.bfloat16), raw["wc"].astype(jnp.bfloat16),
                    preferred_element_type=f32) + raw["bc"]
    return logits, value


if __name__ == "__main__":
    B = 8
    STATE_DIM = 32
    LATENT_DIM = 64
    VOCAB = 256

    key = jax.random.PRNGKey(0)
    k_state, k_params = jax.random.split(key)

    state = jax.random.normal(k_state, (B, STATE_DIM), jnp.float32)
    raw = init_raw_params(k_params, STATE_DIM, LATENT_DIM, VOCAB)
    prepped = prepare_params(raw, STATE_DIM, LATENT_DIM, VOCAB)

    logits, value = actor_critic_forward(state, prepped)
    jax.block_until_ready((logits, value))

    ref_logits, ref_value = reference_forward(state, raw)
    assert logits.shape == (B, VOCAB) and value.shape == (B, 1)
    assert jnp.allclose(logits, ref_logits, atol=2e-2, rtol=2e-2), (
        float(jnp.max(jnp.abs(logits - ref_logits))))
    assert jnp.allclose(value, ref_value, atol=2e-2, rtol=2e-2), (
        float(jnp.max(jnp.abs(value - ref_value))))

    print("KERNEL_OK")
</pallas_src>

<mosaic_0001>
module attributes {stable_mosaic.version = 11 : i64} {
  func.func @actor_critic_kernel(%arg0: memref<16x32xbf16, #tpu.memory_space<vmem>>, %arg1: memref<32x128xbf16, #tpu.memory_space<vmem>>, %arg2: memref<128x128xbf16, #tpu.memory_space<vmem>>, %arg3: memref<4x128xf32, #tpu.memory_space<vmem>>, %arg4: memref<128x384xbf16, #tpu.memory_space<vmem>>, %arg5: memref<1x384xf32, #tpu.memory_space<vmem>>, %arg6: memref<16x384xf32, #tpu.memory_space<vmem>>) attributes {dimension_semantics = [], scalar_prefetch = 0 : i64, scratch_operands = 0 : i64, tpu.core_type = #tpu.core_type<tc>} {
    %c0 = arith.constant 0 : index
    %c0_0 = arith.constant 0 : index
    %0 = vector.load %arg0[%c0, %c0_0] : memref<16x32xbf16, #tpu.memory_space<vmem>>, vector<16x32xbf16>
    %c0_1 = arith.constant 0 : index
    %c0_2 = arith.constant 0 : index
    %1 = vector.load %arg3[%c0_1, %c0_2] : memref<4x128xf32, #tpu.memory_space<vmem>>, vector<4x128xf32>
    %2 = vector.extract_strided_slice %1 {offsets = [0, 0], sizes = [1, 128], strides = [1, 1]} : vector<4x128xf32> to vector<1x128xf32>
    %3 = vector.extract_strided_slice %1 {offsets = [1, 0], sizes = [1, 128], strides = [1, 1]} : vector<4x128xf32> to vector<1x128xf32>
    %4 = vector.extract_strided_slice %1 {offsets = [2, 0], sizes = [1, 128], strides = [1, 1]} : vector<4x128xf32> to vector<1x128xf32>
    %5 = vector.extract_strided_slice %1 {offsets = [3, 0], sizes = [1, 128], strides = [1, 1]} : vector<4x128xf32> to vector<1x128xf32>
    %c0_3 = arith.constant 0 : index
    %c0_4 = arith.constant 0 : index
    %6 = vector.load %arg1[%c0_3, %c0_4] : memref<32x128xbf16, #tpu.memory_space<vmem>>, vector<32x128xbf16>
    %cst = arith.constant dense<0.000000e+00> : vector<16x128xf32>
    %7 = tpu.matmul %0, %6, %cst {dimension_numbers = #tpu.dot_dimension_numbers<[1], [0], [0], [1], [0, 0, 1, 1], [], []>} : vector<16x32xbf16>, vector<32x128xbf16>, vector<16x128xf32> -> vector<16x128xf32>
    %8 = vector.broadcast %2 : vector<1x128xf32> to vector<16x128xf32>
    %9 = arith.addf %7, %8 : vector<16x128xf32>
    %cst_5 = arith.constant 0.000000e+00 : f32
    %10 = vector.broadcast %cst_5 : f32 to vector<16x128xf32>
    %11 = arith.maximumf %9, %10 : vector<16x128xf32>
    %12 = arith.truncf %11 : vector<16x128xf32> to vector<16x128xbf16>
    %c0_6 = arith.constant 0 : index
    %c0_7 = arith.constant 0 : index
    %13 = vector.load %arg2[%c0_6, %c0_7] : memref<128x128xbf16, #tpu.memory_space<vmem>>, vector<128x128xbf16>
    %cst_8 = arith.constant dense<0.000000e+00> : vector<16x128xf32>
    %14 = tpu.matmul %12, %13, %cst_8 {dimension_numbers = #tpu.dot_dimension_numbers<[1], [0], [0], [1], [0, 0, 1, 1], [], []>} : vector<16x128xbf16>, vector<128x128xbf16>, vector<16x128xf32> -> vector<16x128xf32>
    %15 = vector.broadcast %3 : vector<1x128xf32> to vector<16x128xf32>
    %16 = arith.addf %14, %15 : vector<16x128xf32>
    %cst_9 = arith.constant dense<0.000000e+00> : vector<16xf32>
    %17 = vector.multi_reduction <add>, %16, %cst_9 [1] : vector<16x128xf32> to vector<16xf32>
    %18 = vector.shape_cast %17 : vector<16xf32> to vector<16x1xf32>
    %19 = arith.mulf %16, %16 : vector<16x128xf32>
    %cst_10 = arith.constant dense<0.000000e+00> : vector<16xf32>
    %20 = vector.multi_reduction <add>, %19, %cst_10 [1] : vector<16x128xf32> to vector<16xf32>
    %21 = vector.shape_cast %20 : vector<16xf32> to vector<16x1xf32>
    %cst_11 = arith.constant 1.562500e-02 : f32
    %22 = vector.broadcast %cst_11 : f32 to vector<16x1xf32>
    %23 = arith.mulf %18, %22 : vector<16x1xf32>
    %cst_12 = arith.constant 1.562500e-02 : f32
    %24 = vector.broadcast %cst_12 : f32 to vector<16x1xf32>
    %25 = arith.mulf %21, %24 : vector<16x1xf32>
    %26 = arith.mulf %23, %23 : vector<16x1xf32>
    %27 = arith.subf %25, %26 : vector<16x1xf32>
    %28 = vector.broadcast %23 : vector<16x1xf32> to vector<16x128xf32>
    %29 = arith.subf %16, %28 : vector<16x128xf32>
    %cst_13 = arith.constant 9.99999974E-6 : f32
    %30 = vector.broadcast %cst_13 : f32 to vector<16x1xf32>
    %31 = arith.addf %27, %30 : vector<16x1xf32>
    %32 = math.rsqrt %31 : vector<16x1xf32>
    %33 = vector.broadcast %32 : vector<16x1xf32> to vector<16x128xf32>
    %34 = arith.mulf %29, %33 : vector<16x128xf32>
    %35 = vector.broadcast %4 : vector<1x128xf32> to vector<16x128xf32>
    %36 = arith.mulf %34, %35 : vector<16x128xf32>
    %37 = vector.broadcast %5 : vector<1x128xf32> to vector<16x128xf32>
    %38 = arith.addf %36, %37 : vector<16x128xf32>
    %39 = arith.truncf %38 : vector<16x128xf32> to vector<16x128xbf16>
    %c0_14 = arith.constant 0 : index
    %c0_15 = arith.constant 0 : index
    %40 = vector.load %arg4[%c0_14, %c0_15] : memref<128x384xbf16, #tpu.memory_space<vmem>>, vector<128x384xbf16>
    %cst_16 = arith.constant dense<0.000000e+00> : vector<16x384xf32>
    %41 = tpu.matmul %39, %40, %cst_16 {dimension_numbers = #tpu.dot_dimension_numbers<[1], [0], [0], [1], [0, 0, 1, 1], [], []>} : vector<16x128xbf16>, vector<128x384xbf16>, vector<16x384xf32> -> vector<16x384xf32>
    %c0_17 = arith.constant 0 : index
    %c0_18 = arith.constant 0 : index
    %42 = vector.load %arg5[%c0_17, %c0_18] : memref<1x384xf32, #tpu.memory_space<vmem>>, vector<1x384xf32>
    %43 = vector.broadcast %42 : vector<1x384xf32> to vector<16x384xf32>
    %44 = arith.addf %41, %43 : vector<16x384xf32>
    %c0_19 = arith.constant 0 : index
    %c0_20 = arith.constant 0 : index
    %45 = vector.load %arg6[%c0_19, %c0_20] : memref<16x384xf32, #tpu.memory_space<vmem>>, vector<16x384xf32>
    tpu.vector_store %arg6[%c0_19, %c0_20], %44 {strides = array<i32>} : memref<16x384xf32, #tpu.memory_space<vmem>>, vector<16x384xf32>,
    return
  }
}

</mosaic_0001>

<llo_original>
// kernel: tpu_custom_call.1
$region0: #{tpu_custom_call.1}
  #allocation0 [shape = 'u32[]', space=smem, size = 0x4, offset = 0x4, fixed_abs, tag = 'smem constant byte address 0x4 - core index']
  #allocation1 [shape = 'u32[72,128]{1,0:T(1,128)}', space=vmem, size = 0x9000, scoped, tag = 'internal scratch']
  %s0 = inlined_call_operand.hbm [shape: bf16[16,32], index: 0, kind: input, shape index: {}]
  %s1 = inlined_call_operand.hbm [shape: bf16[32,128], index: 1, kind: input, shape index: {}]
  %s2 = inlined_call_operand.hbm [shape: bf16[128,128], index: 2, kind: input, shape index: {}]
  %s3 = inlined_call_operand.hbm [shape: f32[4,128], index: 3, kind: input, shape index: {}]
  %s4 = inlined_call_operand.hbm [shape: bf16[128,384], index: 4, kind: input, shape index: {}]
  %s5 = inlined_call_operand.vmem [shape: f32[1,384], index: 5, kind: input, shape index: {}]
  %s6 = inlined_call_operand.hbm [shape: f32[16,384], index: 6, kind: output, shape index: {}]
  %s7 = sld [smem:[#allocation0]]
  $region54: #{tpu_custom_call.1} parent=0
    _
  %s9 = ssub.s32 1, %s7
  %s10 = scalar_select 0, %s9, %s7
  $region1: #{tpu_custom_call.1} parent=0
    #allocation2 [shape = 'u8[4096]{0}', space=vmem, size = 0x1000, scoped, tag = 'input window, operand 0, single buffered']
    #allocation3 [shape = 's32[1]{0}', space=sflag, size = 0x4, scoped, tag = 'scoped memory for tpu_custom_call.1']
    #allocation4 [shape = 's32[1]{0}', space=sflag, size = 0x4, scoped, tag = 'scoped memory for tpu_custom_call.1']
    #allocation5 [shape = 'u8[8192]{0}', space=vmem, size = 0x2000, scoped, tag = 'input window, operand 1, single buffered']
    #allocation6 [shape = 's32[1]{0}', space=sflag, size = 0x4, scoped, tag = 'scoped memory for tpu_custom_call.1']
    #allocation7 [shape = 'u8[32768]{0}', space=vmem, size = 0x8000, scoped, tag = 'input window, operand 2, single buffered']
    #allocation8 [shape = 'u8[2048]{0}', space=vmem, size = 0x800, scoped, tag = 'input window, operand 3, single buffered']
    #allocation9 [shape = 's32[1]{0}', space=sflag, size = 0x4, scoped, tag = 'scoped memory for tpu_custom_call.1']
    #allocation10 [shape = 'u8[98304]{0}', space=vmem, size = 0x18000, scoped, tag = 'input window, operand 4, single buffered']
    #allocation11 [shape = 'u8[24576]{0}', space=vmem, size = 0x6000, scoped, tag = 'output window, operand 0, single buffered']
    %11 = vsyncpa [#allocation3], 0
    %12 = vsyncpa [#allocation6], 0
    %13 = vsyncpa [#allocation9], 0
    %14 = vsyncpa [#allocation4], 0
    // Predicated region
    $region2: #{tpu_custom_call.1} parent=1 // pred_check
      _
    $region3: #{tpu_custom_call.1} parent=1 // pred_check_branch
      %16 = sbr.rel (0) target = $region5
    $region4: #{tpu_custom_call.1} parent=1 // pred_region
      %18 = vsyncadd [#allocation3], 0
      %s19 = sshll.u32 %s0, 4
      %s20 = int_to_ptr.hbm [resolvable:$true] %s19
      %s21 = sshll.u32 [#allocation2], 4
      %s22 = int_to_ptr.vmem [resolvable:$true] %s21
      %27 = dma.hbm_to_vmem [thread:$0]  %s20, 128, %s22, [#allocation3], 64, 64, 4
    $region5: #{tpu_custom_call.1} parent=1 // pred_fallthru
      _
    // Predicated region
    $region6: #{tpu_custom_call.1} parent=1 // pred_check
      _
    $region7: #{tpu_custom_call.1} parent=1 // pred_check_branch
      %29 = sbr.rel (0) target = $region9
    $region8: #{tpu_custom_call.1} parent=1 // pred_region
      %31 = vsyncadd [#allocation6], 0
      %s32 = sshll.u32 %s1, 4
      %s33 = int_to_ptr.hbm [resolvable:$true] %s32
      %s34 = sshll.u32 [#allocation5], 4
      %s35 = int_to_ptr.vmem [resolvable:$true] %s34
      %40 = dma.hbm_to_vmem [thread:$0]  %s33, 256, %s35, [#allocation6], 64, 64, 4
    $region9: #{tpu_custom_call.1} parent=1 // pred_fallthru
      _
    // Predicated region
    $region10: #{tpu_custom_call.1} parent=1 // pred_check
      _
    $region11: #{tpu_custom_call.1} parent=1 // pred_check_branch
      %42 = sbr.rel (0) target = $region13
    $region12: #{tpu_custom_call.1} parent=1 // pred_region
      %44 = vsyncadd [#allocation6], 0
      %s45 = sshll.u32 %s2, 4
      %s46 = int_to_ptr.hbm [resolvable:$true] %s45
      %s47 = sshll.u32 [#allocation7], 4
      %s48 = int_to_ptr.vmem [resolvable:$true] %s47
      %53 = dma.hbm_to_vmem [thread:$0]  %s46, 1024, %s48, [#allocation6], 64, 64, 4
    $region13: #{tpu_custom_call.1} parent=1 // pred_fallthru
      _
    // Predicated region
    $region14: #{tpu_custom_call.1} parent=1 // pred_check
      _
    $region15: #{tpu_custom_call.1} parent=1 // pred_check_branch
      %55 = sbr.rel (0) target = $region17
    $region16: #{tpu_custom_call.1} parent=1 // pred_region
      %57 = vsyncadd [#allocation9], 0
      %s59 = sshll.u32 %s3, 4
      %s60 = int_to_ptr.hbm [resolvable:$true] %s59
      %s61 = sshll.u32 [#allocation8], 4
      %s62 = int_to_ptr.vmem [resolvable:$true] %s61
      %64 = dma.hbm_to_vmem [thread:$0]  %s60, 64, %s62, [#allocation9]
    $region17: #{tpu_custom_call.1} parent=1 // pred_fallthru
      _
    // Predicated region
    $region18: #{tpu_custom_call.1} parent=1 // pred_check
      _
    $region19: #{tpu_custom_call.1} parent=1 // pred_check_branch
      %66 = sbr.rel (0) target = $region21
    $region20: #{tpu_custom_call.1} parent=1 // pred_region
      %68 = vsyncadd [#allocation9], 0
      %s69 = sshll.u32 %s4, 4
      %s70 = int_to_ptr.hbm [resolvable:$true] %s69
      %s71 = sshll.u32 [#allocation10], 4
      %s72 = int_to_ptr.vmem [resolvable:$true] %s71
      %77 = dma.hbm_to_vmem [thread:$0]  %s70, 3072, %s72, [#allocation9], 192, 192, 12
    $region21: #{tpu_custom_call.1} parent=1 // pred_fallthru
      _
    // Predicated region
    $region22: #{tpu_custom_call.1} parent=1 // pred_check
      _
    $region23: #{tpu_custom_call.1} parent=1 // pred_check_branch
      %79 = sbr.rel (0) target = $region25
    $region24: #{tpu_custom_call.1} parent=1 // pred_region
      _
    $region25: #{tpu_custom_call.1} parent=1 // pred_fallthru
      _
    // Predicated region
    $region26: #{tpu_custom_call.1} parent=1 // pred_check
      _
    $region27: #{tpu_custom_call.1} parent=1 // pred_check_branch
      %81 = sbr.rel (0) target = $region29
    $region28: #{tpu_custom_call.1} parent=1 // pred_region
      %83 = dma.done [#allocation3], 128
    $region29: #{tpu_custom_call.1} parent=1 // pred_fallthru
      _
    // Predicated region
    $region30: #{tpu_custom_call.1} parent=1 // pred_check
      _
    $region31: #{tpu_custom_call.1} parent=1 // pred_check_branch
      %85 = sbr.rel (0) target = $region33
    $region32: #{tpu_custom_call.1} parent=1 // pred_region
      %87 = dma.done [#allocation6], 256
    $region33: #{tpu_custom_call.1} parent=1 // pred_fallthru
      _
    // Predicated region
    $region34: #{tpu_custom_call.1} parent=1 // pred_check
      _
    $region35: #{tpu_custom_call.1} parent=1 // pred_check_branch
      %89 = sbr.rel (0) target = $region37
    $region36: #{tpu_custom_call.1} parent=1 // pred_region
      %91 = dma.done [#allocation6], 1024
    $region37: #{tpu_custom_call.1} parent=1 // pred_fallthru
      _
    // Predicated region
    $region38: #{tpu_custom_call.1} parent=1 // pred_check
      _
    $region39: #{tpu_custom_call.1} parent=1 // pred_check_branch
      %93 = sbr.rel (0) target = $region41
    $region40: #{tpu_custom_call.1} parent=1 // pred_region
      %95 = dma.done [#allocation9], 64
    $region41: #{tpu_custom_call.1} parent=1 // pred_fallthru
      _
    // Predicated region
    $region42: #{tpu_custom_call.1} parent=1 // pred_check
      _
    $region43: #{tpu_custom_call.1} parent=1 // pred_check_branch
      %97 = sbr.rel (0) target = $region45
    $region44: #{tpu_custom_call.1} parent=1 // pred_region
      %99 = dma.done [#allocation9], 3072
    $region45: #{tpu_custom_call.1} parent=1 // pred_fallthru
      _
    %v101 = vld [vmem:[#allocation2] sm:$0xf]
    %v102 = vld [vmem:[#allocation2 + $0x4] sm:$0xf]
    %v103 = vld [vmem:[#allocation8] sm:$0xf]
    %v104 = vld [vmem:[#allocation5] sm:$0xf]
    %v105 = vld [vmem:[#allocation5 + $0x4] sm:$0xf]
    %v106 = vld [vmem:[#allocation5 + $0x8] sm:$0xf]
    %v107 = vld [vmem:[#allocation5 + $0xc] sm:$0xf]
    %v108 = vperm.slane %v103, 0
    %v111 = vunpack.c.l.b16 %v101
    %v112 = vunpack.c.l.b16 %v102
    %v113 = vpack.c.b16 %v112, %v111
    %v118 = vunpack.c.l.b16 %v104
    %v119 = vunpack.c.l.b16 %v105
    %v120 = vunpack.c.l.b16 %v106
    %v121 = vunpack.c.l.b16 %v107
    %v122 = vpack.c.b16 %v119, %v118
    %v123 = vpack.c.b16 %v121, %v120
    %vm126 = vcmask 261120
    %v128 = vsel %vm126, %v113, 0
    %130 = vmatpush.bf16.msra.mxu0 0
    %131 = vmatpush.bf16.msra.mxu0 0
    %132 = vmatpush.bf16.msra.mxu0 0
    %133 = vmatpush.bf16.msra.mxu0 0
    %134 = vmatpush.bf16.msra.mxu0 0
    %135 = vmatpush.bf16.msra.mxu0 0
    %136 = vmatpush.bf16.msra.mxu0 %v123
    %137 = vmatpush.bf16.msra.mxu0 %v122
    %138 = vmatmul.bf16.gmra.mxu0 %v128
    %v139 = vpop.f32.mrf.mxu0
    %v140 = vadd.f32 %v108, %v139
    %v141 = vpop.f32.mrf.mxu0
    %v142 = vadd.f32 %v108, %v141
    %143 = vdwg.mxu0
    %v144 = vmax.f32 %v140, 0.0
    %v145 = vmax.f32 %v142, 0.0
    %v146 = vpack.c.bf16 %v145, %v144
    %v147 = vld [vmem:[#allocation7] sm:$0xf]
    %v148 = vld [vmem:[#allocation7 + $0x4] sm:$0xf]
    %v149 = vld [vmem:[#allocation7 + $0x8] sm:$0xf]
    %v150 = vld [vmem:[#allocation7 + $0xc] sm:$0xf]
    %v151 = vld [vmem:[#allocation7 + $0x10] sm:$0xf]
    %v152 = vld [vmem:[#allocation7 + $0x14] sm:$0xf]
    %v153 = vld [vmem:[#allocation7 + $0x18] sm:$0xf]
    %v154 = vld [vmem:[#allocation7 + $0x1c] sm:$0xf]
    %v155 = vld [vmem:[#allocation7 + $0x20] sm:$0xf]
    %v156 = vld [vmem:[#allocation7 + $0x24] sm:$0xf]
    %v157 = vld [vmem:[#allocation7 + $0x28] sm:$0xf]
    %v158 = vld [vmem:[#allocation7 + $0x2c] sm:$0xf]
    %v159 = vld [vmem:[#allocation7 + $0x30] sm:$0xf]
    %v160 = vld [vmem:[#allocation7 + $0x34] sm:$0xf]
    %v161 = vld [vmem:[#allocation7 + $0x38] sm:$0xf]
    %v162 = vld [vmem:[#allocation7 + $0x3c] sm:$0xf]
    %v163 = vperm.slane %v103, 1
    %v180 = vunpack.c.l.b16 %v147
    %v181 = vunpack.c.l.b16 %v148
    %v182 = vunpack.c.l.b16 %v149
    %v183 = vunpack.c.l.b16 %v150
    %v184 = vunpack.c.l.b16 %v151
    %v185 = vunpack.c.l.b16 %v152
    %v186 = vunpack.c.l.b16 %v153
    %v187 = vunpack.c.l.b16 %v154
    %v188 = vunpack.c.l.b16 %v155
    %v189 = vunpack.c.l.b16 %v156
    %v190 = vunpack.c.l.b16 %v157
    %v191 = vunpack.c.l.b16 %v158
    %v192 = vunpack.c.l.b16 %v159
    %v193 = vunpack.c.l.b16 %v160
    %v194 = vunpack.c.l.b16 %v161
    %v195 = vunpack.c.l.b16 %v162
    %v196 = vpack.c.b16 %v181, %v180
    %v197 = vpack.c.b16 %v183, %v182
    %v198 = vpack.c.b16 %v185, %v184
    %v199 = vpack.c.b16 %v187, %v186
    %v200 = vpack.c.b16 %v189, %v188
    %v201 = vpack.c.b16 %v191, %v190
    %v202 = vpack.c.b16 %v193, %v192
    %v203 = vpack.c.b16 %v195, %v194
    %212 = vmatpush.bf16.msra.mxu0 %v203
    %213 = vmatpush.bf16.msra.mxu0 %v202
    %214 = vmatpush.bf16.msra.mxu0 %v201
    %215 = vmatpush.bf16.msra.mxu0 %v200
    %216 = vmatpush.bf16.msra.mxu0 %v199
    %217 = vmatpush.bf16.msra.mxu0 %v198
    %218 = vmatpush.bf16.msra.mxu0 %v197
    %219 = vmatpush.bf16.msra.mxu0 %v196
    %220 = vmatmul.bf16.gmra.mxu0 %v146
    %v221 = vpop.f32.mrf.mxu0
    %v222 = vadd.f32 %v163, %v221
    %v223 = vpop.f32.mrf.mxu0
    %v224 = vadd.f32 %v163, %v223
    %225 = vdwg.mxu0
    %226 = vadd.xlane.f32.xlu0 %v222
    %v227 = vpop.xlane.xlu0 %226
    %228 = vadd.xlane.f32.xlu0 %v224
    %v229 = vpop.xlane.xlu0 %228
    %v230 = vmul.f32 %v222, %v222
    %v231 = vmul.f32 %v224, %v224
    %232 = vadd.xlane.f32.xlu0 %v230
    %v233 = vpop.xlane.xlu0 %232
    %234 = vadd.xlane.f32.xlu0 %v231
    %v235 = vpop.xlane.xlu0 %234
    %v236 = vmul.f32 %v227, 0.015625
    %v237 = vmul.f32 %v229, 0.015625
    %v238 = vmul.f32 %v233, 0.015625
    %v239 = vmul.f32 %v235, 0.015625
    %v240 = vmul.f32 %v236, %v236
    %v241 = vmul.f32 %v237, %v237
    %v242 = vsub.f32 %v238, %v240
    %v243 = vsub.f32 %v239, %v241
    %v244 = vsub.f32 %v222, %v236
    %v245 = vsub.f32 %v224, %v237
    %v246 = vadd.f32 %v242, 1e-05
    %v247 = vadd.f32 %v243, 1e-05
    %v248 = vrsqrt.pop %v246
    %v249 = vmul.f32 %v248, %v246
    %v250 = vmul.f32 %v249, %v248
    %v251 = vmul.f32 0.5, %v250
    %v252 = vsub.f32 1.5, %v251
    %v253 = vmul.f32 %v248, %v252
    %vm254 = vweird.f32 %v246
    %vm255 = vweird.f32 %v248
    %vm256 = vmor %vm254, %vm255
    %v257 = vsel %vm256, %v248, %v253
    %v258 = vrsqrt.pop %v247
    %v259 = vmul.f32 %v258, %v247
    %v260 = vmul.f32 %v259, %v258
    %v261 = vmul.f32 0.5, %v260
    %v262 = vsub.f32 1.5, %v261
    %v263 = vmul.f32 %v258, %v262
    %vm264 = vweird.f32 %v247
    %vm265 = vweird.f32 %v258
    %vm266 = vmor %vm264, %vm265
    %v267 = vsel %vm266, %v258, %v263
    %v268 = vmul.f32 %v244, %v257
    %v269 = vmul.f32 %v245, %v267
    %v270 = vperm.slane %v103, 2
    %v271 = vmul.f32 %v268, %v270
    %v272 = vmul.f32 %v269, %v270
    %v273 = vperm.slane %v103, 3
    %v274 = vadd.f32 %v271, %v273
    %v275 = vadd.f32 %v272, %v273
    %v276 = vpack.c.bf16 %v275, %v274
    %v277 = vld [vmem:[#allocation10] sm:$0xff]
    %v278 = vld [vmem:[#allocation10 + $0x8] sm:$0xf]
    %v279 = vld [vmem:[#allocation10 + $0xc] sm:$0xff]
    %v280 = vld [vmem:[#allocation10 + $0x14] sm:$0xf]
    %v281 = vld [vmem:[#allocation10 + $0x18] sm:$0xff]
    %v282 = vld [vmem:[#allocation10 + $0x20] sm:$0xf]
    %v283 = vld [vmem:[#allocation10 + $0x24] sm:$0xff]
    %v284 = vld [vmem:[#allocation10 + $0x2c] sm:$0xf]
    %v285 = vld [vmem:[#allocation10 + $0x30] sm:$0xff]
    %v286 = vld [vmem:[#allocation10 + $0x38] sm:$0xf]
    %v287 = vld [vmem:[#allocation10 + $0x3c] sm:$0xff]
    %v288 = vld [vmem:[#allocation10 + $0x44] sm:$0xf]
    %v289 = vld [vmem:[#allocation10 + $0x48] sm:$0xff]
    %v290 = vld [vmem:[#allocation10 + $0x50] sm:$0xf]
    %v291 = vld [vmem:[#allocation10 + $0x54] sm:$0xff]
    %v292 = vld [vmem:[#allocation10 + $0x5c] sm:$0xf]
    %v293 = vld [vmem:[#allocation10 + $0x60] sm:$0xff]
    %v294 = vld [vmem:[#allocation10 + $0x68] sm:$0xf]
    %v295 = vld [vmem:[#allocation10 + $0x6c] sm:$0xff]
    %v296 = vld [vmem:[#allocation10 + $0x74] sm:$0xf]
    %v297 = vld [vmem:[#allocation10 + $0x78] sm:$0xff]
    %v298 = vld [vmem:[#allocation10 + $0x80] sm:$0xf]
    %v299 = vld [vmem:[#allocation10 + $0x84] sm:$0xff]
    %v300 = vld [vmem:[#allocation10 + $0x8c] sm:$0xf]
    %v301 = vld [vmem:[#allocation10 + $0x90] sm:$0xff]
    %v302 = vld [vmem:[#allocation10 + $0x98] sm:$0xf]
    %v303 = vld [vmem:[#allocation10 + $0x9c] sm:$0xff]
    %v304 = vld [vmem:[#allocation10 + $0xa4] sm:$0xf]
    %v305 = vld [vmem:[#allocation10 + $0xa8] sm:$0xff]
    %v306 = vld [vmem:[#allocation10 + $0xb0] sm:$0xf]
    %v307 = vld [vmem:[#allocation10 + $0xb4] sm:$0xff]
    %v308 = vld [vmem:[#allocation10 + $0xbc] sm:$0xf]
    %v309 = vld [vmem:[%s5] sm:$0x7]
    %v311 = vperm.slane %v309, 0
    %v312 = vperm.slane %v309, 1
    %v313 = vperm.slane %v309, 2
    %v349 = vunpack.c.l.b16 %v277
    %v350 = vunpack.c.h.b16 %v277
    %v351 = vunpack.c.l.b16 %v278
    %v352 = vunpack.c.l.b16 %v279
    %v353 = vunpack.c.h.b16 %v279
    %v354 = vunpack.c.l.b16 %v280
    %v355 = vunpack.c.l.b16 %v281
    %v356 = vunpack.c.h.b16 %v281
    %v357 = vunpack.c.l.b16 %v282
    %v358 = vunpack.c.l.b16 %v283
    %v359 = vunpack.c.h.b16 %v283
    %v360 = vunpack.c.l.b16 %v284
    %v361 = vunpack.c.l.b16 %v285
    %v362 = vunpack.c.h.b16 %v285
    %v363 = vunpack.c.l.b16 %v286
    %v364 = vunpack.c.l.b16 %v287
    %v365 = vunpack.c.h.b16 %v287
    %v366 = vunpack.c.l.b16 %v288
    %v367 = vunpack.c.l.b16 %v289
    %v368 = vunpack.c.h.b16 %v289
    %v369 = vunpack.c.l.b16 %v290
    %v370 = vunpack.c.l.b16 %v291
    %v371 = vunpack.c.h.b16 %v291
    %v372 = vunpack.c.l.b16 %v292
    %v373 = vunpack.c.l.b16 %v293
    %v374 = vunpack.c.h.b16 %v293
    %v375 = vunpack.c.l.b16 %v294
    %v376 = vunpack.c.l.b16 %v295
    %v377 = vunpack.c.h.b16 %v295
    %v378 = vunpack.c.l.b16 %v296
    %v379 = vunpack.c.l.b16 %v297
    %v380 = vunpack.c.h.b16 %v297
    %v381 = vunpack.c.l.b16 %v298
    %v382 = vunpack.c.l.b16 %v299
    %v383 = vunpack.c.h.b16 %v299
    %v384 = vunpack.c.l.b16 %v300
    %v385 = vunpack.c.l.b16 %v301
    %v386 = vunpack.c.h.b16 %v301
    %v387 = vunpack.c.l.b16 %v302
    %v388 = vunpack.c.l.b16 %v303
    %v389 = vunpack.c.h.b16 %v303
    %v390 = vunpack.c.l.b16 %v304
    %v391 = vunpack.c.l.b16 %v305
    %v392 = vunpack.c.h.b16 %v305
    %v393 = vunpack.c.l.b16 %v306
    %v394 = vunpack.c.l.b16 %v307
    %v395 = vunpack.c.h.b16 %v307
    %v396 = vunpack.c.l.b16 %v308
    %v397 = vpack.c.b16 %v352, %v349
    %v398 = vpack.c.b16 %v353, %v350
    %v399 = vpack.c.b16 %v354, %v351
    %v400 = vpack.c.b16 %v358, %v355
    %v401 = vpack.c.b16 %v359, %v356
    %v402 = vpack.c.b16 %v360, %v357
    %v403 = vpack.c.b16 %v364, %v361
    %v404 = vpack.c.b16 %v365, %v362
    %v405 = vpack.c.b16 %v366, %v363
    %v406 = vpack.c.b16 %v370, %v367
    %v407 = vpack.c.b16 %v371, %v368
    %v408 = vpack.c.b16 %v372, %v369
    %v409 = vpack.c.b16 %v376, %v373
    %v410 = vpack.c.b16 %v377, %v374
    %v411 = vpack.c.b16 %v378, %v375
    %v412 = vpack.c.b16 %v382, %v379
    %v413 = vpack.c.b16 %v383, %v380
    %v414 = vpack.c.b16 %v384, %v381
    %v415 = vpack.c.b16 %v388, %v385
    %v416 = vpack.c.b16 %v389, %v386
    %v417 = vpack.c.b16 %v390, %v387
    %v418 = vpack.c.b16 %v394, %v391
    %v419 = vpack.c.b16 %v395, %v392
    %v420 = vpack.c.b16 %v396, %v393
    %445 = vmatpush.bf16.msra.mxu0 %v418
    %446 = vmatpush.bf16.msra.mxu0 %v415
    %447 = vmatpush.bf16.msra.mxu0 %v412
    %448 = vmatpush.bf16.msra.mxu0 %v409
    %449 = vmatpush.bf16.msra.mxu0 %v406
    %450 = vmatpush.bf16.msra.mxu0 %v403
    %451 = vmatpush.bf16.msra.mxu0 %v400
    %452 = vmatpush.bf16.msra.mxu0 %v397
    %453 = vmatmul.bf16.gmra.mxu0 %v276
    %v454 = vpop.f32.mrf.mxu0
    %v455 = vadd.f32 %v311, %v454
    %v456 = vpop.f32.mrf.mxu0
    %v457 = vadd.f32 %v311, %v456
    %458 = vdwg.mxu0
    %459 = vmatpush.bf16.msra.mxu0 %v419
    %460 = vmatpush.bf16.msra.mxu0 %v416
    %461 = vmatpush.bf16.msra.mxu0 %v413
    %462 = vmatpush.bf16.msra.mxu0 %v410
    %463 = vmatpush.bf16.msra.mxu0 %v407
    %464 = vmatpush.bf16.msra.mxu0 %v404
    %465 = vmatpush.bf16.msra.mxu0 %v401
    %466 = vmatpush.bf16.msra.mxu0 %v398
    %467 = vmatmul.bf16.gmra.mxu0 %v276
    %v468 = vpop.f32.mrf.mxu0
    %v469 = vadd.f32 %v312, %v468
    %v470 = vpop.f32.mrf.mxu0
    %v471 = vadd.f32 %v312, %v470
    %472 = vdwg.mxu0
    %473 = vmatpush.bf16.msra.mxu0 %v420
    %474 = vmatpush.bf16.msra.mxu0 %v417
    %475 = vmatpush.bf16.msra.mxu0 %v414
    %476 = vmatpush.bf16.msra.mxu0 %v411
    %477 = vmatpush.bf16.msra.mxu0 %v408
    %478 = vmatpush.bf16.msra.mxu0 %v405
    %479 = vmatpush.bf16.msra.mxu0 %v402
    %480 = vmatpush.bf16.msra.mxu0 %v399
    %481 = vmatmul.bf16.gmra.mxu0 %v276
    %v482 = vpop.f32.mrf.mxu0
    %v483 = vadd.f32 %v313, %v482
    %v484 = vpop.f32.mrf.mxu0
    %v485 = vadd.f32 %v313, %v484
    %486 = vdwg.mxu0
    %487 = vst [vmem:[#allocation11] sm:$0xff] %v455
    %488 = vst [vmem:[#allocation11 + $0x8] sm:$0xff] %v469
    %489 = vst [vmem:[#allocation11 + $0x10] sm:$0xff] %v483
    %490 = vst [vmem:[#allocation11 + $0x18] sm:$0xff] %v457
    %491 = vst [vmem:[#allocation11 + $0x20] sm:$0xff] %v471
    %492 = vst [vmem:[#allocation11 + $0x28] sm:$0xff] %v485
    // Predicated region
    $region46: #{tpu_custom_call.1} parent=1 // pred_check
      _
    $region47: #{tpu_custom_call.1} parent=1 // pred_check_branch
      %494 = sbr.rel (0) target = $region49
    $region48: #{tpu_custom_call.1} parent=1 // pred_region
      %496 = vsyncadd [#allocation4], 0
      %s497 = sshll.u32 [#allocation11], 4
      %s498 = int_to_ptr.vmem [resolvable:$true] %s497
      %s499 = sshll.u32 %s6, 4
      %s500 = int_to_ptr.hbm [resolvable:$true] %s499
      %505 = dma.vmem_to_hbm [thread:$0]  %s498, 768, %s500, [#allocation4], 384, 384, 24
    $region49: #{tpu_custom_call.1} parent=1 // pred_fallthru
      _
    // Predicated region
    $region50: #{tpu_custom_call.1} parent=1 // pred_check
      _
    $region51: #{tpu_custom_call.1} parent=1 // pred_check_branch
      %507 = sbr.rel (0) target = $region53
    $region52: #{tpu_custom_call.1} parent=1 // pred_region
      %509 = dma.done [#allocation4], 768
    $region53: #{tpu_custom_call.1} parent=1 // pred_fallthru
      _
    %510 = vsyncpa [#allocation3], 1
    %511 = vsyncpa [#allocation6], 1
    %512 = vsyncpa [#allocation9], 1
    %513 = vsyncpa [#allocation4], 1

</llo_original>
